<compile_context>
chip_gen: v5e
topology: v5e:2x2
jax: 0.10.0
libtpu: 0.0.40
codegen_flags: <defaults>
</compile_context>

<pallas_src>
import functools
import math

import jax
import jax.numpy as jnp
from jax import lax
from jax.experimental import pallas as pl
from jax.experimental.pallas import tpu as pltpu


def _nmt_loss_kernel(x_ref, lbl_ref, out_ref, *, label_smoothing, n_valid, tile_n):
    """Per-tile partial loss sum, written lane-dense into out_ref (1, 1, 128)."""
    # TODO(synk): for bf16 inputs the max / compare could stay in bf16 on v6e/v7x; kept
    # in f32 here for precision and simplicity (the kernel is HBM-bound anyway).
    x = x_ref[...].astype(jnp.float32)                        # (tile_n, V)
    v = x.shape[-1]

    # Numerically-stable per-row logsumexp; exp is the only per-element transcendental.
    m = jnp.max(x, axis=-1, keepdims=True)
    lse = jnp.log(jnp.sum(jnp.exp(x - m), axis=-1, keepdims=True)) + m   # (tile_n, 1)

    labels = lbl_ref[...]                                      # (tile_n, 1) int32
    col = lax.broadcasted_iota(jnp.int32, x.shape, 1)

    if label_smoothing > 0.0:
        eps = label_smoothing / (v - 1)
        conf = 1.0 - label_smoothing
        # C = sum_j t_j * log(t_j), a Python-time constant.
        c = conf * math.log(conf) + (v - 1) * eps * math.log(eps)
        # Fused gather + rowsum: sum_j t_j * x_j in a single pass.
        w = jnp.where(col == labels, jnp.float32(conf), jnp.float32(eps))
        weighted = jnp.sum(w * x, axis=-1, keepdims=True)      # (tile_n, 1)
        # KL per row = C - sum_j t_j*logp_j ; since sum_j t_j == 1, the lse coeff is 1.
        per_row = c + lse - weighted
    else:
        # NLL per row = -logp[label] = lse - x[label]
        weighted = jnp.sum(jnp.where(col == labels, x, 0.0), axis=-1, keepdims=True)
        per_row = lse - weighted

    # Select (not multiply) away rows >= true N: boundary-block rows hold unspecified
    # data and may produce Inf/NaN in per_row; the select discards them safely.
    i = pl.program_id(0)
    row = i * tile_n + lax.broadcasted_iota(jnp.int32, (tile_n, 1), 0)
    per_row = jnp.where(row < n_valid, per_row, 0.0)

    tile_sum = jnp.sum(per_row)
    lane = lax.broadcasted_iota(jnp.int32, (1, 1, 128), 2)
    out_ref[...] = jnp.where(lane == 0, tile_sum, jnp.float32(0.0))


def _vmem_capacity_bytes():
    """Physical VMEM capacity; conservative 64 MiB (v7x) fallback."""
    try:
        info = pltpu.get_tpu_info()
        cap = getattr(info, "vmem_capacity_bytes", None)
        if cap:
            return int(cap)
    except Exception:
        pass
    return 64 << 20


def _choose_tile_n(n, sublane, max_rows_budget):
    """Largest VMEM-budgeted row tile (sublane multiple), kept to >= 2 grid steps."""
    rows = max_rows_budget
    # Keep at least 2 grid steps when possible so the "parallel" grid axis can be
    # sharded across v7x's two TensorCores (extra step costs ~0.35us on 1-TC parts).
    if rows >= n and n > sublane:
        half = -(-n // 2)
        half = -(-half // sublane) * sublane
        rows = min(rows, half)
    n_pad = -(-n // sublane) * sublane
    rows = min(rows, n_pad)
    return max(sublane, rows)


def nmt_criterion(dec_outs, labels, label_smoothing=0.0, tile_n=None):
    """JAX wrapper reproducing NMTCritierion(label_smoothing).forward(dec_outs, labels)."""
    v = dec_outs.shape[-1]
    dec_outs = dec_outs.reshape(-1, v)
    n = dec_outs.shape[0]
    labels2d = labels.reshape(-1, 1).astype(jnp.int32)

    itemsize = jnp.dtype(dec_outs.dtype).itemsize
    sublane = {4: 8, 2: 16, 1: 32}.get(itemsize, 8)

    # Generation-aware VMEM budget for the double-buffered pipeline.
    vmem_cap = _vmem_capacity_bytes()
    pipeline_budget = (80 << 20) if vmem_cap >= (100 << 20) else (44 << 20)
    headroom = 2 << 20
    row_bytes = v * itemsize + 4                      # logits row + int32 label
    max_rows_budget = (pipeline_budget - headroom) // 2 // row_bytes
    max_rows_budget = max(sublane, (max_rows_budget // sublane) * sublane)

    if tile_n is None:
        tile_n = _choose_tile_n(n, sublane, max_rows_budget)
    else:
        tile_n = max(sublane, -(-int(tile_n) // sublane) * sublane)
        # Shrink tile_n rather than under-provisioning VMEM for double-buffering.
        tile_n = min(tile_n, max_rows_budget)

    num_tiles = -(-n // tile_n)                       # partial last block handled in-kernel

    kernel = functools.partial(
        _nmt_loss_kernel,
        label_smoothing=float(label_smoothing),
        n_valid=n,
        tile_n=tile_n,
    )

    in_block = tile_n * v * itemsize
    lbl_block = tile_n * 4
    out_block = 128 * 4
    need = 2 * (in_block + lbl_block + out_block) + headroom
    vmem_limit = int(min(max(need, 16 << 20), pipeline_budget))

    partials = pl.pallas_call(
        kernel,
        out_shape=jax.ShapeDtypeStruct((num_tiles, 1, 128), jnp.float32),
        grid_spec=pltpu.PrefetchScalarGridSpec(
            num_scalar_prefetch=0,
            grid=(num_tiles,),
            in_specs=[
                pl.BlockSpec((tile_n, v), lambda i: (i, 0)),
                pl.BlockSpec((tile_n, 1), lambda i: (i, 0)),
            ],
            out_specs=pl.BlockSpec((1, 1, 128), lambda i: (i, 0, 0)),
        ),
        compiler_params=pltpu.CompilerParams(
            dimension_semantics=("parallel",),
            vmem_limit_bytes=vmem_limit),
    )(dec_outs, labels2d)

    total = jnp.sum(partials)
    if label_smoothing > 0.0:
        # KLDivLoss(reduce=None) -> reduction='mean' over all N*V elements.
        # TODO(synk): many NMT recipes intend 'batchmean'/sum; this matches reduce=None.
        return total / (n * v)
    # NLLLoss(reduce=None) -> reduction='mean' over N rows.
    # TODO(synk): PyTorch NLLLoss's default ignore_index=-100 (padding sentinel) is not handled.
    return total / n


def _reference(dec_outs, labels, label_smoothing):
    """Plain-JAX reference mirroring the PyTorch module."""
    logp = jax.nn.log_softmax(dec_outs.astype(jnp.float32), axis=-1)
    n, v = logp.shape
    onehot = jax.nn.one_hot(labels, v, dtype=jnp.float32)
    if label_smoothing > 0.0:
        eps = label_smoothing / (v - 1)
        conf = 1.0 - label_smoothing
        target = onehot * conf + (1.0 - onehot) * eps
        elem = target * (jnp.log(target) - logp)
        return jnp.sum(elem) / (n * v)
    return jnp.mean(-jnp.sum(onehot * logp, axis=-1))


if __name__ == "__main__":
    key = jax.random.PRNGKey(0)
    k1, k2, k3, k4, k5, k6 = jax.random.split(key, 6)

    ok = True

    # Case 1: small flattened batch (N = 2*8 tokens, V = 128 vocab), autosized tiles.
    N, V = 16, 128
    dec_outs = jax.random.normal(k1, (N, V), dtype=jnp.float32)
    labels = jax.random.randint(k2, (N,), 0, V, dtype=jnp.int32)
    for ls in (0.0, 0.1):
        loss = jax.block_until_ready(nmt_criterion(dec_outs, labels, label_smoothing=ls))
        ref = _reference(dec_outs, labels, ls)
        if not jnp.allclose(loss, ref, rtol=1e-5, atol=1e-5):
            ok = False
            print(f"MISMATCH case1 ls={ls}: kernel={loss} ref={ref}")

    # Case 2: explicit tile_n with a partial last block (N=40, tile_n=16 -> grid=3).
    N2, V2 = 40, 256
    dec_outs2 = jax.random.normal(k3, (N2, V2), dtype=jnp.float32)
    labels2 = jax.random.randint(k4, (N2,), 0, V2, dtype=jnp.int32)
    for ls in (0.0, 0.1):
        loss = jax.block_until_ready(
            nmt_criterion(dec_outs2, labels2, label_smoothing=ls, tile_n=16))
        ref = _reference(dec_outs2, labels2, ls)
        if not jnp.allclose(loss, ref, rtol=1e-5, atol=1e-5):
            ok = False
            print(f"MISMATCH case2 ls={ls}: kernel={loss} ref={ref}")

    # Case 3: bf16 inputs (sublane=16 rounding), V not a multiple of 128.
    N3, V3 = 24, 384
    dec_outs3 = jax.random.normal(k5, (N3, V3), dtype=jnp.bfloat16)
    labels3 = jax.random.randint(k6, (N3,), 0, V3, dtype=jnp.int32)
    for ls in (0.0, 0.1):
        loss = jax.block_until_ready(nmt_criterion(dec_outs3, labels3, label_smoothing=ls))
        ref = _reference(dec_outs3, labels3, ls)
        if not jnp.allclose(loss, ref, rtol=1e-4, atol=1e-4):
            ok = False
            print(f"MISMATCH case3 ls={ls}: kernel={loss} ref={ref}")

    if ok:
        print("KERNEL_OK")
</pallas_src>

<mosaic_0001>
module attributes {stable_mosaic.version = 11 : i64} {
  func.func @_nmt_loss_kernel(%arg0: i32, %arg1: memref<8x128xf32, #tpu.memory_space<vmem>>, %arg2: memref<8x1xi32, #tpu.memory_space<vmem>>, %arg3: memref<1x1x128xf32, #tpu.memory_space<vmem>>) attributes {dimension_semantics = [#tpu.dimension_semantics<parallel>], iteration_bounds = array<i64: 2>, scalar_prefetch = 0 : i64, scratch_operands = 0 : i64, tpu.core_type = #tpu.core_type<tc>, window_params = [{transform_indices = @transform_0, window_bounds = array<i64: 8, 128>}, {transform_indices = @transform_1, window_bounds = array<i64: 8, 1>}, {transform_indices = @transform_2, window_bounds = array<i64: 1, 1, 128>}]} {
    %c0 = arith.constant 0 : index
    %c0_0 = arith.constant 0 : index
    %0 = vector.load %arg1[%c0, %c0_0] : memref<8x128xf32, #tpu.memory_space<vmem>>, vector<8x128xf32>
    %cst = arith.constant dense<0xFF800000> : vector<8xf32>
    %1 = vector.multi_reduction <maximumf>, %0, %cst [1] : vector<8x128xf32> to vector<8xf32>
    %2 = vector.shape_cast %1 : vector<8xf32> to vector<8x1xf32>
    %3 = vector.broadcast %2 : vector<8x1xf32> to vector<8x128xf32>
    %4 = arith.subf %0, %3 : vector<8x128xf32>
    %5 = math.exp %4 : vector<8x128xf32>
    %cst_1 = arith.constant dense<0.000000e+00> : vector<8xf32>
    %6 = vector.multi_reduction <add>, %5, %cst_1 [1] : vector<8x128xf32> to vector<8xf32>
    %7 = vector.shape_cast %6 : vector<8xf32> to vector<8x1xf32>
    %8 = math.log %7 : vector<8x1xf32>
    %9 = arith.addf %8, %2 : vector<8x1xf32>
    %c0_2 = arith.constant 0 : index
    %c0_3 = arith.constant 0 : index
    %10 = vector.load %arg2[%c0_2, %c0_3] : memref<8x1xi32, #tpu.memory_space<vmem>>, vector<8x1xi32>
    %11 = tpu.iota {dimensions = array<i32: 1>} : vector<8x128xi32>
    %12 = vector.broadcast %10 : vector<8x1xi32> to vector<8x128xi32>
    %13 = arith.cmpi eq, %11, %12 : vector<8x128xi32>
    %cst_4 = arith.constant 0.000000e+00 : f32
    %14 = vector.broadcast %cst_4 : f32 to vector<8x128xf32>
    %15 = arith.select %13, %0, %14 : vector<8x128xi1>, vector<8x128xf32>
    %cst_5 = arith.constant dense<0.000000e+00> : vector<8xf32>
    %16 = vector.multi_reduction <add>, %15, %cst_5 [1] : vector<8x128xf32> to vector<8xf32>
    %17 = vector.shape_cast %16 : vector<8xf32> to vector<8x1xf32>
    %18 = arith.subf %9, %17 : vector<8x1xf32>
    %c8_i32 = arith.constant 8 : i32
    %19 = arith.muli %arg0, %c8_i32 : i32
    %20 = tpu.iota {dimensions = array<i32: 0>} : vector<8x1xi32>
    %21 = vector.broadcast %19 : i32 to vector<8x1xi32>
    %22 = arith.addi %21, %20 : vector<8x1xi32>
    %c16_i32 = arith.constant 16 : i32
    %23 = vector.broadcast %c16_i32 : i32 to vector<8x1xi32>
    %24 = arith.cmpi slt, %22, %23 : vector<8x1xi32>
    %cst_6 = arith.constant 0.000000e+00 : f32
    %25 = vector.broadcast %cst_6 : f32 to vector<8x1xf32>
    %26 = arith.select %24, %18, %25 : vector<8x1xi1>, vector<8x1xf32>
    %27 = vector.shape_cast %26 : vector<8x1xf32> to vector<1x8x1xf32>
    %cst_7 = arith.constant dense<0.000000e+00> : vector<1xf32>
    %28 = vector.multi_reduction <add>, %27, %cst_7 [1, 2] : vector<1x8x1xf32> to vector<1xf32>
    %29 = vector.shape_cast %28 : vector<1xf32> to vector<1x1x1xf32>
    %30 = vector.extract %29[0, 0, 0] : f32 from vector<1x1x1xf32>
    %31 = tpu.iota {dimensions = array<i32: 2>} : vector<1x1x128xi32>
    %c0_i32 = arith.constant 0 : i32
    %32 = vector.broadcast %c0_i32 : i32 to vector<1x1x128xi32>
    %33 = arith.cmpi eq, %31, %32 : vector<1x1x128xi32>
    %cst_8 = arith.constant 0.000000e+00 : f32
    %34 = vector.broadcast %30 : f32 to vector<1x1x128xf32>
    %35 = vector.broadcast %cst_8 : f32 to vector<1x1x128xf32>
    %36 = arith.select %33, %34, %35 : vector<1x1x128xi1>, vector<1x1x128xf32>
    %c0_9 = arith.constant 0 : index
    %c0_10 = arith.constant 0 : index
    %c0_11 = arith.constant 0 : index
    %37 = vector.load %arg3[%c0_9, %c0_10, %c0_11] : memref<1x1x128xf32, #tpu.memory_space<vmem>>, vector<1x1x128xf32>
    tpu.vector_store %arg3[%c0_9, %c0_10, %c0_11], %36 {strides = array<i32>} : memref<1x1x128xf32, #tpu.memory_space<vmem>>, vector<1x1x128xf32>,
    return
  }
  func.func @transform_0(%arg0: i32) -> (i32, i32) {
    %c0_i32 = arith.constant 0 : i32
    %c0_i32_0 = arith.constant 0 : i32
    return %arg0, %c0_i32 : i32, i32
  }
  func.func @transform_1(%arg0: i32) -> (i32, i32) {
    %c0_i32 = arith.constant 0 : i32
    %c0_i32_0 = arith.constant 0 : i32
    return %arg0, %c0_i32 : i32, i32
  }
  func.func @transform_2(%arg0: i32) -> (i32, i32, i32) {
    %c0_i32 = arith.constant 0 : i32
    %c0_i32_0 = arith.constant 0 : i32
    %c0_i32_1 = arith.constant 0 : i32
    return %arg0, %c0_i32, %c0_i32_0 : i32, i32, i32
  }
}

</mosaic_0001>

<llo_original>
// kernel: tpu_custom_call.1
$region0: #{tpu_custom_call.1}
  #allocation0 [shape = 'u32[]', space=smem, size = 0x4, offset = 0x4, fixed_abs, tag = 'smem constant byte address 0x4 - core index']
  #allocation1 [shape = 'u32[72,128]{1,0:T(1,128)}', space=vmem, size = 0x9000, scoped, tag = 'internal scratch']
  %s0 = inlined_call_operand.vmem [shape: f32[16,128], index: 0, kind: input, shape index: {}]
  %s1 = inlined_call_operand.vmem [shape: s32[16,1], index: 1, kind: input, shape index: {}]
  %s2 = inlined_call_operand.hbm [shape: f32[2,1,128], index: 2, kind: output, shape index: {}]
  %s3 = sld [smem:[#allocation0]]
  $region41: #{tpu_custom_call.1} parent=0
    _
  %s5 = ssub.s32 1, %s3
  %s6 = scalar_select 0, %s5, %s3
  $region1: #{tpu_custom_call.1} parent=0
    #allocation2 [shape = 'u8[1024]{0}', space=vmem, size = 0x400, scoped, tag = 'output window, operand 0']
    #allocation3 [shape = 's32[2]{0}', space=sflag, size = 0x8, scoped, tag = 'scoped memory for tpu_custom_call.1']
    %7 = vsyncpa [#allocation3], 0
    %s8 = scalar_lea.sflag [#allocation3], 1
    %9 = vsyncpa %s8, 0
    loop: start=0, step=1, limit=4
    $region2: #{tpu_custom_call.1} parent=1 // loop_pre_header
      _
    $region3: #{tpu_custom_call.1} parent=1 // loop_header
      %s11 = sphi 0, %s15
      %p12 = scmp.ge.s32.totalorder %s11, 4
      %s21 = sphi 0, %s23
      %s24 = sphi 0, %s21
      %s25 = sphi 0, %s24
      %s41 = sphi 0, %s25
      %s47 = sphi 0, %s49
      %s50 = sphi 0, %s47
      %s51 = sphi 0, %s50
      %s67 = sphi 0, %s51
      %s73 = sphi 0, %s75
      %s76 = sphi 0, %s73
      %s77 = sphi 0, %s76
      %s93 = sphi 0, %s77
    $region4: #{tpu_custom_call.1} parent=1 // loop_header_branch
      %14 = sbr.rel (%p12) target = $region8
    $region5: #{tpu_custom_call.1} parent=1 // loop_body
      %s16 = ssub.s32 %s11, 1
      %s17 = ssub.s32 %s11, 2
      %s18 = sadd.s32 %s11, 1
      %s19 = ssub.s32 %s11, %s18
      %p20 = scmp.eq.s32.totalorder %s19, 0
      %s22 = sadd.s32 %s21, 1
      %s23 = scalar_select %p20, %s21, %s22
      %p26 = pneg %p20
      %p27 = scmp.eq.s32.totalorder %s11, 1
      %p28 = por %p26, %p27
      %p29 = scmp.ne.s32.totalorder %s21, %s24
      %p30 = scmp.eq.s32.totalorder %s11, 0
      %p31 = por %p29, %p30
      %p32 = scmp.ne.s32.totalorder %s21, %s24
      %p33 = scmp.eq.s32.totalorder %s16, 1
      %p34 = por %p32, %p33
      %p35 = scmp.ne.s32.totalorder %s24, %s25
      %p36 = scmp.eq.s32.totalorder %s16, 0
      %p37 = por %p35, %p36
      %p38 = scmp.ne.s32.totalorder %s24, %s25
      %p39 = scmp.eq.s32.totalorder %s17, 1
      %p40 = por %p38, %p39
      %p42 = scmp.ne.s32.totalorder %s25, %s41
      %p43 = scmp.eq.s32.totalorder %s17, 0
      %p44 = por %p42, %p43
      %s45 = ssub.s32 %s11, %s18
      %p46 = scmp.eq.s32.totalorder %s45, 0
      %s48 = sadd.s32 %s47, 1
      %s49 = scalar_select %p46, %s47, %s48
      %p52 = pneg %p46
      %p53 = scmp.eq.s32.totalorder %s11, 1
      %p54 = por %p52, %p53
      %p55 = scmp.ne.s32.totalorder %s47, %s50
      %p56 = scmp.eq.s32.totalorder %s11, 0
      %p57 = por %p55, %p56
      %p58 = scmp.ne.s32.totalorder %s47, %s50
      %p59 = scmp.eq.s32.totalorder %s16, 1
      %p60 = por %p58, %p59
      %p61 = scmp.ne.s32.totalorder %s50, %s51
      %p62 = scmp.eq.s32.totalorder %s16, 0
      %p63 = por %p61, %p62
      %p64 = scmp.ne.s32.totalorder %s50, %s51
      %p65 = scmp.eq.s32.totalorder %s17, 1
      %p66 = por %p64, %p65
      %p68 = scmp.ne.s32.totalorder %s51, %s67
      %p69 = scmp.eq.s32.totalorder %s17, 0
      %p70 = por %p68, %p69
      %s71 = ssub.s32 %s11, %s18
      %p72 = scmp.eq.s32.totalorder %s71, 0
      %s74 = sadd.s32 %s73, 1
      %s75 = scalar_select %p72, %s73, %s74
      %p78 = pneg %p72
      %p79 = scmp.eq.s32.totalorder %s11, 1
      %p80 = por %p78, %p79
      %p81 = scmp.ne.s32.totalorder %s73, %s76
      %p82 = scmp.eq.s32.totalorder %s11, 0
      %p83 = por %p81, %p82
      %p84 = scmp.ne.s32.totalorder %s73, %s76
      %p85 = scmp.eq.s32.totalorder %s16, 1
      %p86 = por %p84, %p85
      %p87 = scmp.ne.s32.totalorder %s76, %s77
      %p88 = scmp.eq.s32.totalorder %s16, 0
      %p89 = por %p87, %p88
      %p90 = scmp.ne.s32.totalorder %s76, %s77
      %p91 = scmp.eq.s32.totalorder %s17, 1
      %p92 = por %p90, %p91
      %p94 = scmp.ne.s32.totalorder %s77, %s93
      %p95 = scmp.eq.s32.totalorder %s17, 0
      %p96 = por %p94, %p95
      %p97 = scmp.le.s32.totalorder 1, %s11
      %p98 = scmp.lt.s32.totalorder %s11, 3
      %p99 = pnand %p97, %p98
      %p100 = pneg %p99
      // Predicated region
      $region9: #{tpu_custom_call.1} parent=5 // pred_check
        _
      $region10: #{tpu_custom_call.1} parent=5 // pred_check_branch
        %102 = sbr.rel (%p99) target = $region12
      $region11: #{tpu_custom_call.1} parent=5 // pred_region
        %s103 = ssub.s32 %s11, 1
      $region12: #{tpu_custom_call.1} parent=5 // pred_fallthru
        _
      %p104 = scmp.lt.s32.totalorder %s11, 2
      // Predicated region
      $region13: #{tpu_custom_call.1} parent=5 // pred_check
        %p105 = pneg %p104
      $region14: #{tpu_custom_call.1} parent=5 // pred_check_branch
        %107 = sbr.rel (%p105) target = $region16
      $region15: #{tpu_custom_call.1} parent=5 // pred_region
        // Predicated region
        $region17: #{tpu_custom_call.1} parent=15 // pred_check
          %p108 = pneg %p31
        $region18: #{tpu_custom_call.1} parent=15 // pred_check_branch
          %110 = sbr.rel (%p108) target = $region20
        $region19: #{tpu_custom_call.1} parent=15 // pred_region
          %p111 = scmp.lt.s32.totalorder %s11, 1
          %s112 = scalar_select %p111, %s11, 1
          %s113 = smul.addr %s112, 8
          %s114 = scalar_lea.vmem %s0, %s113
        $region20: #{tpu_custom_call.1} parent=15 // pred_fallthru
          _
        // Predicated region
        $region21: #{tpu_custom_call.1} parent=15 // pred_check
          %p115 = pneg %p57
        $region22: #{tpu_custom_call.1} parent=15 // pred_check_branch
          %117 = sbr.rel (%p115) target = $region24
        $region23: #{tpu_custom_call.1} parent=15 // pred_region
          %p118 = scmp.lt.s32.totalorder %s11, 1
          %s119 = scalar_select %p118, %s11, 1
          %s120 = smul.addr %s119, 8
          %s121 = scalar_lea.vmem %s1, %s120
        $region24: #{tpu_custom_call.1} parent=15 // pred_fallthru
          _
      $region16: #{tpu_custom_call.1} parent=5 // pred_fallthru
        _
      %p122 = scmp.le.s32.totalorder 1, %s11
      %p123 = scmp.lt.s32.totalorder %s11, 3
      %p124 = pnand %p122, %p123
      %p125 = pneg %p124
      // Predicated region
      $region25: #{tpu_custom_call.1} parent=5 // pred_check
        _
      $region26: #{tpu_custom_call.1} parent=5 // pred_check_branch
        %127 = sbr.rel (%p124) target = $region28
      $region27: #{tpu_custom_call.1} parent=5 // pred_region
        %s128 = ssub.s32 %s11, 1
        %p129 = scmp.lt.s32.totalorder %s16, 1
        %s130 = scalar_select %p129, %s16, 1
        %s131 = smul.addr %s130, 8
        %s132 = scalar_lea.vmem %s0, %s131
        %p133 = pneg %p37
        %p134 = pneg %p34
        %p135 = scmp.lt.s32.totalorder %s16, 1
        %s136 = scalar_select %p135, %s16, 1
        %s137 = smul.addr %s136, 8
        %s138 = scalar_lea.vmem %s1, %s137
        %p139 = pneg %p63
        %p140 = pneg %p60
        %p141 = pneg %p89
        %p142 = pneg %p86
        %s143 = sand.u32 %s76, 1
        %s144 = scalar_lea.sflag [#allocation3], %s143
        %s145 = sand.u32 %s76, 1
        %s146 = scalar_lea.vmem [#allocation2], %s145
        %p147 = scmp.lt.s32.totalorder %s16, 1
        %s148 = scalar_select %p147, %s16, 1
        %s149 = smul.addr %s148, 8
        %s150 = scalar_lea.vmem %s0, %s149
        %p151 = scmp.lt.s32.totalorder %s16, 1
        %s152 = scalar_select %p151, %s16, 1
        %s153 = smul.addr %s152, 8
        %s154 = scalar_lea.vmem %s1, %s153
        %v155 = vld [vmem:[%s150] sm:$0xff]
        %156 = vmax.xlane.f32.xlu0 %v155
        %v157 = vpop.xlane.xlu0 %156
        %v158 = vsub.f32 %v155, %v157
        %v159 = vmul.f32 %v158, 1.442695
        %v160 = vpow.pop %v159
        %161 = vadd.xlane.f32.xlu0 %v160
        %v162 = vpop.xlane.xlu0 %161
        %v163 = vlog2.pop %v162
        %v164 = vmul.f32 %v163, 0.6931472
        %v165 = vadd.f32 %v164, %v157
        %v166 = vld [vmem:[%s154] sm:$0xff]
        %v167 = vlaneseq
        %v168 = vand.u32 %v167, 127
        %169 = vset.pattern.permute.xlu0 0
        %170 = vperm.xlu0 %169, %v166
        %v171 = vpop.permute.xlu0 %170
        %vm172 = vcmp.eq.s32.totalorder %v168, %v171
        %v173 = vsel %vm172, %v155, 0.0
        %174 = vadd.xlane.f32.xlu0 %v173
        %v175 = vpop.xlane.xlu0 %174
        %v176 = vsub.f32 %v165, %v175
        %s177 = smul.u32 %s16, 8
        %v178 = vlaneseq
        %v179 = vshrl.u32 %v178, 7
        %v180 = vstv %s177
        %v181 = vadd.s32 %v180, %v179
        %vm182 = vcmp.lt.s32.totalorder %v181, 16
        %v183 = vsel %vm182, %v176, 0.0
        %vm184 = vcmask 7168
        %v185 = vsel %vm184, %v183, 0.0
        %186 = vadd.xlane.f32.xlu0 %v185
        %v187 = vpop.xlane.xlu0 %186
        %v188 = vrot.slane %v187, 4
        %v189 = vadd.f32 %v187, %v188
        %v190 = vrot.slane %v189, 2
        %v191 = vadd.f32 %v189, %v190
        %v192 = vrot.slane %v191, 1
        %v193 = vadd.f32 %v191, %v192
        %s194 = vtos %v193
        %vm195 = vcmp.eq.s32.totalorder %v168, 0
        %v196 = vstv %s194
        %v197 = vsel %vm195, %v196, 0.0
        %198 = vst [vmem:[%s146] sm:$0x1] %v197
        %s199 = sand.u32 %s76, 1
        %s200 = scalar_lea.sflag [#allocation3], %s199
        %s201 = sand.u32 %s76, 1
        %s202 = scalar_lea.vmem [#allocation2], %s201
        // Predicated region
        $region29: #{tpu_custom_call.1} parent=27 // pred_check
          %p203 = pneg %p86
        $region30: #{tpu_custom_call.1} parent=27 // pred_check_branch
          %205 = sbr.rel (%p203) target = $region32
        $region31: #{tpu_custom_call.1} parent=27 // pred_region
          %207 = vsyncadd %s200, 0
          %s208 = scalar_lea.hbm %s2, %s16
          %s210 = sshll.u32 %s202, 4
          %s211 = int_to_ptr.vmem [resolvable:$true] %s210
          %s212 = sshll.u32 %s208, 4
          %s213 = int_to_ptr.hbm [resolvable:$true] %s212
          %215 = dma.vmem_to_hbm [thread:$0]  %s211, 16, %s213, %s200
        $region32: #{tpu_custom_call.1} parent=27 // pred_fallthru
          _
      $region28: #{tpu_custom_call.1} parent=5 // pred_fallthru
        _
      %p216 = scmp.le.s32.totalorder 2, %s11
      // Predicated region
      $region33: #{tpu_custom_call.1} parent=5 // pred_check
        %p217 = pneg %p216
      $region34: #{tpu_custom_call.1} parent=5 // pred_check_branch
        %219 = sbr.rel (%p217) target = $region36
      $region35: #{tpu_custom_call.1} parent=5 // pred_region
        %s220 = ssub.s32 %s11, 2
        // Predicated region
        $region37: #{tpu_custom_call.1} parent=35 // pred_check
          %p221 = pneg %p92
        $region38: #{tpu_custom_call.1} parent=35 // pred_check_branch
          %223 = sbr.rel (%p221) target = $region40
        $region39: #{tpu_custom_call.1} parent=35 // pred_region
          %s224 = sand.u32 %s77, 1
          %s225 = scalar_lea.sflag [#allocation3], %s224
          %s226 = sand.u32 %s77, 1
          %s227 = scalar_lea.vmem [#allocation2], %s226
          %229 = dma.done %s225, 16
        $region40: #{tpu_custom_call.1} parent=35 // pred_fallthru
          _
      $region36: #{tpu_custom_call.1} parent=5 // pred_fallthru
        _
    $region6: #{tpu_custom_call.1} parent=1 // loop_footer
      %s15 = sadd.s32 1, %s11
    $region7: #{tpu_custom_call.1} parent=1 // loop_footer_branch
      %10 = sbr.rel target = $region3
    $region8: #{tpu_custom_call.1} parent=1 // loop_exit
      _
    %230 = vsyncpa [#allocation3], 1
    %s231 = scalar_lea.sflag [#allocation3], 1
    %232 = vsyncpa %s231, 1

</llo_original>
